<compile_context>
chip_gen: v5e
topology: v5e:2x2
jax: 0.10.0
libtpu: 0.0.40
codegen_flags: <defaults>
</compile_context>

<pallas_src>
import jax
import jax.numpy as jnp
from jax.experimental import pallas as pl
from jax.experimental.pallas import tpu as pltpu


def _round_up(x, m):
    return (x + m - 1) // m * m


def _vmem_budget_bytes():
    """~75% of this generation's VMEM capacity (per TensorCore)."""
    cap = 64 * 1024 * 1024                      # conservative fallback (v7x per-TC)
    try:
        info = pltpu.get_tpu_info()
        cap = int(getattr(info, "vmem_capacity_bytes", cap)) or cap
    except Exception:
        pass
    return int(0.75 * cap)


def _linear_exp_kernel(x_ref, w1_ref, b1_ref, w2_ref, b2_ref, out_ref, h_acc):
    k = pl.program_id(1)

    @pl.when(k == 0)
    def _():
        h_acc[...] = jnp.zeros_like(h_acc)

    # Linear(F, H): accumulate partial products over the F (reduction) axis in f32.
    h_acc[...] += jnp.dot(x_ref[...], w1_ref[...],
                          preferred_element_type=jnp.float32)

    @pl.when(k == pl.num_programs(1) - 1)
    def _():
        h = jnp.maximum(h_acc[...] + b1_ref[...], 0.0)     # bias + ReLU in f32
        # Dropout(0.5) in eval mode == identity.
        out = jnp.dot(h.astype(w2_ref.dtype), w2_ref[...],
                      preferred_element_type=jnp.float32)
        out_ref[...] = (out + b2_ref[...]).astype(out_ref.dtype)


def linear_exp_forward(exp, w1, b1, w2, b2, *, block_b=512, block_k=None,
                       compute_dtype=jnp.bfloat16):
    """Fused MLP forward:  relu(exp @ w1 + b1) @ w2 + b2.

    exp: [B, F]   w1: [F, H]   b1: [H]   w2: [H, C]   b2: [C]
    compute_dtype: dtype fed to the MXU for x / w1 / w2 (default bfloat16);
      accumulation, bias and ReLU stay in f32.  Pass exp.dtype for exact f32.
    block_k: optional F-axis tile (multiple of 128); default auto (w1 resident
      when it fits the VMEM budget, streamed K-blocks otherwise).
    returns: [B, C] in exp.dtype.
    """
    B, F = exp.shape
    H = w1.shape[1]
    C = w2.shape[1]
    out_dtype = exp.dtype
    cdt = jnp.dtype(compute_dtype) if compute_dtype is not None else jnp.dtype(exp.dtype)
    x_item = cdt.itemsize
    o_item = jnp.dtype(out_dtype).itemsize
    sub = 16 if x_item < 4 else 8                 # sublane quantum for packed dtypes

    budget = _vmem_budget_bytes()
    H_pad = _round_up(H, 128)

    # ---- F (reduction) axis tiling: w1 resident if it fits, streamed otherwise ----
    small_resident = H_pad * C * x_item + (H_pad + C) * 4     # w2, b1, b2 (single-buffered)
    if block_k is not None:
        TK = min(_round_up(block_k, 128), _round_up(F, 128))
    elif F * H_pad * x_item + small_resident <= int(0.6 * budget):
        TK = F                                                # single K step, w1 resident
    else:
        TK = 2048
        while TK > 128 and small_resident + 2 * TK * H_pad * x_item > int(0.5 * budget):
            TK //= 2
    if TK >= F:
        TK, F_pad, n_k = F, F, 1
        w1_vmem = F * H_pad * x_item                          # resident, single-buffered
    else:
        F_pad = _round_up(F, TK)
        n_k = F_pad // TK
        w1_vmem = 2 * TK * H_pad * x_item                     # streamed, double-buffered

    # ---- batch tiling ----
    def vmem_use(tb):
        return (w1_vmem + small_resident
                + 2 * tb * TK * x_item          # streaming x tile (double-buffered)
                + 2 * tb * C * o_item           # output tile (double-buffered)
                + tb * H_pad * 4)               # f32 hidden accumulator scratch

    B_sub = _round_up(B, sub)
    TB = min(_round_up(block_b, sub), B_sub)
    # v7x megacore: ensure the "parallel" batch axis has >= 2 steps when possible.
    if B_sub >= 2 * sub and B_sub <= TB:
        TB = _round_up(pl.cdiv(B_sub, 2), sub)
    # Shrink TB if the tiles would exceed the per-TC VMEM budget.
    while TB > sub and vmem_use(TB) > budget:
        TB = max(sub, _round_up(TB // 2, sub))
    # Rebalance tiles (same grid count, minimal batch padding).
    n_b = pl.cdiv(B_sub, TB)
    TB = _round_up(pl.cdiv(B_sub, n_b), sub)
    B_pad = n_b * TB

    # ---- wrapper-side padding / dtype plumbing (layout only, no compute hoisting) ----
    x_p = exp
    if B_pad != B or F_pad != F:
        x_p = jnp.pad(x_p, ((0, B_pad - B), (0, F_pad - F)))
    x_p = x_p.astype(cdt)
    w1_p = w1
    if F_pad != F or H_pad != H:
        w1_p = jnp.pad(w1_p, ((0, F_pad - F), (0, H_pad - H)))
    w1_p = w1_p.astype(cdt)
    w2_p = w2
    if H_pad != H:
        w2_p = jnp.pad(w2_p, ((0, H_pad - H), (0, 0)))
    w2_p = w2_p.astype(cdt)
    b1_p = jnp.pad(b1, ((0, H_pad - H),)) if H_pad != H else b1
    b1_2d = b1_p.astype(jnp.float32).reshape(1, H_pad)
    b2_2d = b2.astype(jnp.float32).reshape(1, C)

    cost = pl.CostEstimate(
        flops=2 * B_pad * (F_pad * H_pad + H_pad * C),
        transcendentals=0,
        bytes_accessed=(B_pad * F_pad * x_item
                        + (F_pad * H_pad + H_pad * C) * x_item
                        + (H_pad + C) * 4
                        + B_pad * C * o_item),
    )

    def _run(single_buffer_weights):
        def const_spec(shape):
            if single_buffer_weights:
                return pl.BlockSpec(shape, lambda i, k: (0, 0),
                                    pipeline_mode=pl.Buffered(1))
            return pl.BlockSpec(shape, lambda i, k: (0, 0))

        if n_k == 1:
            w1_spec = const_spec((TK, H_pad))                 # fetched once, resident
        else:
            w1_spec = pl.BlockSpec((TK, H_pad), lambda i, k: (k, 0))  # streamed K-blocks

        return pl.pallas_call(
            _linear_exp_kernel,
            out_shape=jax.ShapeDtypeStruct((B_pad, C), out_dtype),
            grid_spec=pltpu.PrefetchScalarGridSpec(
                num_scalar_prefetch=0,
                grid=(n_b, n_k),
                in_specs=[
                    pl.BlockSpec((TB, TK), lambda i, k: (i, k)),   # streaming x tile
                    w1_spec,
                    const_spec((1, H_pad)),                        # b1
                    const_spec((H_pad, C)),                        # w2
                    const_spec((1, C)),                            # b2
                ],
                out_specs=pl.BlockSpec((TB, C), lambda i, k: (i, 0)),
                scratch_shapes=[pltpu.VMEM((TB, H_pad), jnp.float32)],
            ),
            compiler_params=pltpu.CompilerParams(
                dimension_semantics=("parallel", "arbitrary"),
                vmem_limit_bytes=budget,
            ),
            cost_estimate=cost,
        )(x_p, w1_p, b1_2d, w2_p, b2_2d)

    try:
        out_p = _run(True)
    except Exception:
        # Fallback for JAX builds without BlockSpec(pipeline_mode=...); identical math.
        out_p = _run(False)

    return out_p[:B] if B_pad != B else out_p


def init_params(key, num_features_exp, hidden_channels, num_classes,
                dtype=jnp.float32):
    """Deterministic init matching torch.nn.Linear's uniform(-1/sqrt(fan_in), +)."""
    k1, k2, k3, k4 = jax.random.split(key, 4)
    bound1 = 1.0 / jnp.sqrt(num_features_exp)
    bound2 = 1.0 / jnp.sqrt(hidden_channels)
    # Stored already transposed: w1 is [F, H], w2 is [H, C].
    w1 = jax.random.uniform(k1, (num_features_exp, hidden_channels),
                            dtype, -bound1, bound1)
    b1 = jax.random.uniform(k2, (hidden_channels,), dtype, -bound1, bound1)
    w2 = jax.random.uniform(k3, (hidden_channels, num_classes),
                            dtype, -bound2, bound2)
    b2 = jax.random.uniform(k4, (num_classes,), dtype, -bound2, bound2)
    return w1, b1, w2, b2


if __name__ == "__main__":
    key = jax.random.PRNGKey(0)
    kx, kp, kx2, kp2 = jax.random.split(key, 4)

    # --- small shapes implied by the module: exp is [batch, num_features_exp] ---
    batch, F, H, C = 8, 32, 16, 4
    exp = jax.random.normal(kx, (batch, F), jnp.float32)
    w1, b1, w2, b2 = init_params(kp, F, H, C)
    ref = jnp.maximum(exp @ w1 + b1, 0.0) @ w2 + b2

    # exact f32 compute path
    out = jax.block_until_ready(
        linear_exp_forward(exp, w1, b1, w2, b2, compute_dtype=jnp.float32))
    assert out.shape == (batch, C)
    assert jnp.allclose(out, ref, atol=1e-5, rtol=1e-5)

    # default bf16 compute path (f32 accumulation)
    out_bf = jax.block_until_ready(linear_exp_forward(exp, w1, b1, w2, b2))
    assert out_bf.shape == (batch, C)
    assert jnp.allclose(out_bf, ref, atol=1e-1, rtol=1e-1)

    # --- larger, non-aligned shapes: exercises batch tiling + B padding paths ---
    B2, F2, H2, C2 = 1037, 256, 128, 10
    exp2 = jax.random.normal(kx2, (B2, F2), jnp.float32)
    w1b, b1b, w2b, b2b = init_params(kp2, F2, H2, C2)
    ref2 = jnp.maximum(exp2 @ w1b + b1b, 0.0) @ w2b + b2b

    out2 = jax.block_until_ready(
        linear_exp_forward(exp2, w1b, b1b, w2b, b2b, compute_dtype=jnp.float32))
    assert out2.shape == (B2, C2)
    assert jnp.allclose(out2, ref2, atol=1e-2, rtol=1e-2)

    # default bf16 compute (halves HBM traffic; f32 accumulation)
    out3 = jax.block_until_ready(linear_exp_forward(exp2, w1b, b1b, w2b, b2b))
    assert out3.shape == (B2, C2)
    assert jnp.allclose(out3, ref2, atol=1e-1, rtol=1e-1)

    # forced F-axis (reduction) tiling path: streams w1 in (TK, H) blocks
    out4 = jax.block_until_ready(
        linear_exp_forward(exp2, w1b, b1b, w2b, b2b,
                           compute_dtype=jnp.float32, block_k=128))
    assert out4.shape == (B2, C2)
    assert jnp.allclose(out4, ref2, atol=1e-2, rtol=1e-2)

    print("KERNEL_OK")
</pallas_src>

<mosaic_0001>
module attributes {stable_mosaic.version = 11 : i64} {
  func.func @_linear_exp_kernel(%arg0: i32, %arg1: i32, %arg2: memref<8x32xf32, #tpu.memory_space<vmem>>, %arg3: memref<32x128xf32, #tpu.memory_space<vmem>>, %arg4: memref<1x128xf32, #tpu.memory_space<vmem>>, %arg5: memref<128x4xf32, #tpu.memory_space<vmem>>, %arg6: memref<1x4xf32, #tpu.memory_space<vmem>>, %arg7: memref<8x4xf32, #tpu.memory_space<vmem>>, %arg8: memref<8x128xf32, #tpu.memory_space<vmem>>) attributes {dimension_semantics = [#tpu.dimension_semantics<parallel>, #tpu.dimension_semantics<arbitrary>], iteration_bounds = array<i64: 1, 1>, scalar_prefetch = 0 : i64, scratch_operands = 1 : i64, tpu.core_type = #tpu.core_type<tc>, window_params = [{transform_indices = @transform_0, window_bounds = array<i64: 8, 32>}, {pipeline_mode = #tpu.pipeline_mode<synchronous>, transform_indices = @transform_1, window_bounds = array<i64: 32, 128>}, {pipeline_mode = #tpu.pipeline_mode<synchronous>, transform_indices = @transform_2, window_bounds = array<i64: 1, 128>}, {pipeline_mode = #tpu.pipeline_mode<synchronous>, transform_indices = @transform_3, window_bounds = array<i64: 128, 4>}, {pipeline_mode = #tpu.pipeline_mode<synchronous>, transform_indices = @transform_4, window_bounds = array<i64: 1, 4>}, {transform_indices = @transform_5, window_bounds = array<i64: 8, 4>}]} {
    %c0_i32 = arith.constant 0 : i32
    %0 = arith.cmpi eq, %arg1, %c0_i32 : i32
    %1 = arith.extui %0 : i1 to i32
    %c0_i32_0 = arith.constant 0 : i32
    %2 = arith.cmpi ne, %1, %c0_i32_0 : i32
    scf.if %2 {
      %cst_10 = arith.constant 0.000000e+00 : f32
      %12 = vector.broadcast %cst_10 : f32 to vector<8x128xf32>
      %c0_11 = arith.constant 0 : index
      %c0_12 = arith.constant 0 : index
      %13 = vector.load %arg8[%c0_11, %c0_12] : memref<8x128xf32, #tpu.memory_space<vmem>>, vector<8x128xf32>
      tpu.vector_store %arg8[%c0_11, %c0_12], %12 {strides = array<i32>} : memref<8x128xf32, #tpu.memory_space<vmem>>, vector<8x128xf32>,
    } else {
    }
    %c0 = arith.constant 0 : index
    %c0_1 = arith.constant 0 : index
    %3 = vector.load %arg8[%c0, %c0_1] : memref<8x128xf32, #tpu.memory_space<vmem>>, vector<8x128xf32>
    %c0_2 = arith.constant 0 : index
    %c0_3 = arith.constant 0 : index
    %4 = vector.load %arg2[%c0_2, %c0_3] : memref<8x32xf32, #tpu.memory_space<vmem>>, vector<8x32xf32>
    %c0_4 = arith.constant 0 : index
    %c0_5 = arith.constant 0 : index
    %5 = vector.load %arg3[%c0_4, %c0_5] : memref<32x128xf32, #tpu.memory_space<vmem>>, vector<32x128xf32>
    %cst = arith.constant dense<0.000000e+00> : vector<8x128xf32>
    %6 = tpu.matmul %4, %5, %cst {dimension_numbers = #tpu.dot_dimension_numbers<[1], [0], [0], [1], [0, 0, 1, 1], [], []>} : vector<8x32xf32>, vector<32x128xf32>, vector<8x128xf32> -> vector<8x128xf32>
    %7 = arith.addf %3, %6 : vector<8x128xf32>
    %c0_6 = arith.constant 0 : index
    %c0_7 = arith.constant 0 : index
    %8 = vector.load %arg8[%c0_6, %c0_7] : memref<8x128xf32, #tpu.memory_space<vmem>>, vector<8x128xf32>
    tpu.vector_store %arg8[%c0_6, %c0_7], %7 {strides = array<i32>} : memref<8x128xf32, #tpu.memory_space<vmem>>, vector<8x128xf32>,
    %c0_i32_8 = arith.constant 0 : i32
    %9 = arith.cmpi eq, %arg1, %c0_i32_8 : i32
    %10 = arith.extui %9 : i1 to i32
    %c0_i32_9 = arith.constant 0 : i32
    %11 = arith.cmpi ne, %10, %c0_i32_9 : i32
    scf.if %11 {
      %c0_10 = arith.constant 0 : index
      %c0_11 = arith.constant 0 : index
      %12 = vector.load %arg8[%c0_10, %c0_11] : memref<8x128xf32, #tpu.memory_space<vmem>>, vector<8x128xf32>
      %c0_12 = arith.constant 0 : index
      %c0_13 = arith.constant 0 : index
      %13 = vector.load %arg4[%c0_12, %c0_13] : memref<1x128xf32, #tpu.memory_space<vmem>>, vector<1x128xf32>
      %14 = vector.broadcast %13 : vector<1x128xf32> to vector<8x128xf32>
      %15 = arith.addf %12, %14 : vector<8x128xf32>
      %cst_14 = arith.constant 0.000000e+00 : f32
      %16 = vector.broadcast %cst_14 : f32 to vector<8x128xf32>
      %17 = arith.maximumf %15, %16 : vector<8x128xf32>
      %c0_15 = arith.constant 0 : index
      %c0_16 = arith.constant 0 : index
      %18 = vector.load %arg5[%c0_15, %c0_16] : memref<128x4xf32, #tpu.memory_space<vmem>>, vector<128x4xf32>
      %cst_17 = arith.constant dense<0.000000e+00> : vector<8x4xf32>
      %19 = tpu.matmul %17, %18, %cst_17 {dimension_numbers = #tpu.dot_dimension_numbers<[1], [0], [0], [1], [0, 0, 1, 1], [], []>} : vector<8x128xf32>, vector<128x4xf32>, vector<8x4xf32> -> vector<8x4xf32>
      %c0_18 = arith.constant 0 : index
      %c0_19 = arith.constant 0 : index
      %20 = vector.load %arg6[%c0_18, %c0_19] : memref<1x4xf32, #tpu.memory_space<vmem>>, vector<1x4xf32>
      %21 = vector.broadcast %20 : vector<1x4xf32> to vector<8x4xf32>
      %22 = arith.addf %19, %21 : vector<8x4xf32>
      %c0_20 = arith.constant 0 : index
      %c0_21 = arith.constant 0 : index
      %23 = vector.load %arg7[%c0_20, %c0_21] : memref<8x4xf32, #tpu.memory_space<vmem>>, vector<8x4xf32>
      tpu.vector_store %arg7[%c0_20, %c0_21], %22 {strides = array<i32>} : memref<8x4xf32, #tpu.memory_space<vmem>>, vector<8x4xf32>,
    } else {
    }
    return
  }
  func.func @transform_0(%arg0: i32, %arg1: i32) -> (i32, i32) {
    %c0_i32 = arith.constant 0 : i32
    return %arg0, %arg1 : i32, i32
  }
  func.func @transform_1(%arg0: i32, %arg1: i32) -> (i32, i32) {
    %c0_i32 = arith.constant 0 : i32
    %c0_i32_0 = arith.constant 0 : i32
    %c0_i32_1 = arith.constant 0 : i32
    return %c0_i32, %c0_i32_0 : i32, i32
  }
  func.func @transform_2(%arg0: i32, %arg1: i32) -> (i32, i32) {
    %c0_i32 = arith.constant 0 : i32
    %c0_i32_0 = arith.constant 0 : i32
    %c0_i32_1 = arith.constant 0 : i32
    return %c0_i32, %c0_i32_0 : i32, i32
  }
  func.func @transform_3(%arg0: i32, %arg1: i32) -> (i32, i32) {
    %c0_i32 = arith.constant 0 : i32
    %c0_i32_0 = arith.constant 0 : i32
    %c0_i32_1 = arith.constant 0 : i32
    return %c0_i32, %c0_i32_0 : i32, i32
  }
  func.func @transform_4(%arg0: i32, %arg1: i32) -> (i32, i32) {
    %c0_i32 = arith.constant 0 : i32
    %c0_i32_0 = arith.constant 0 : i32
    %c0_i32_1 = arith.constant 0 : i32
    return %c0_i32, %c0_i32_0 : i32, i32
  }
  func.func @transform_5(%arg0: i32, %arg1: i32) -> (i32, i32) {
    %c0_i32 = arith.constant 0 : i32
    %c0_i32_0 = arith.constant 0 : i32
    return %arg0, %c0_i32 : i32, i32
  }
}

module attributes {stable_mosaic.version = 11 : i64} {
  func.func @_linear_exp_kernel(%arg0: i32, %arg1: i32, %arg2: memref<8x32xf32, #tpu.memory_space<vmem>>, %arg3: memref<32x128xf32, #tpu.memory_space<vmem>>, %arg4: memref<1x128xf32, #tpu.memory_space<vmem>>, %arg5: memref<128x4xf32, #tpu.memory_space<vmem>>, %arg6: memref<1x4xf32, #tpu.memory_space<vmem>>, %arg7: memref<8x4xf32, #tpu.memory_space<vmem>>, %arg8: memref<8x128xf32, #tpu.memory_space<vmem>>) attributes {dimension_semantics = [#tpu.dimension_semantics<parallel>, #tpu.dimension_semantics<arbitrary>], iteration_bounds = array<i64: 1, 1>, scalar_prefetch = 0 : i64, scratch_operands = 1 : i64, tpu.core_type = #tpu.core_type<tc>, window_params = [{transform_indices = @transform_0, window_bounds = array<i64: 8, 32>}, {pipeline_mode = #tpu.pipeline_mode<synchronous>, transform_indices = @transform_1, window_bounds = array<i64: 32, 128>}, {pipeline_mode = #tpu.pipeline_mode<synchronous>, transform_indices = @transform_2, window_bounds = array<i64: 1, 128>}, {pipeline_mode = #tpu.pipeline_mode<synchronous>, transform_indices = @transform_3, window_bounds = array<i64: 128, 4>}, {pipeline_mode = #tpu.pipeline_mode<synchronous>, transform_indices = @transform_4, window_bounds = array<i64: 1, 4>}, {transform_indices = @transform_5, window_bounds = array<i64: 8, 4>}]} {
    %c0_i32 = arith.constant 0 : i32
    %0 = arith.cmpi eq, %arg1, %c0_i32 : i32
    %1 = arith.extui %0 : i1 to i32
    %c0_i32_0 = arith.constant 0 : i32
    %2 = arith.cmpi ne, %1, %c0_i32_0 : i32
    scf.if %2 {
      %cst_10 = arith.constant 0.000000e+00 : f32
      %12 = vector.broadcast %cst_10 : f32 to vector<8x128xf32>
      %c0_11 = arith.constant 0 : index
      %c0_12 = arith.constant 0 : index
      %13 = vector.load %arg8[%c0_11, %c0_12] : memref<8x128xf32, #tpu.memory_space<vmem>>, vector<8x128xf32>
      tpu.vector_store %arg8[%c0_11, %c0_12], %12 {strides = array<i32>} : memref<8x128xf32, #tpu.memory_space<vmem>>, vector<8x128xf32>,
    } else {
    }
    %c0 = arith.constant 0 : index
    %c0_1 = arith.constant 0 : index
    %3 = vector.load %arg8[%c0, %c0_1] : memref<8x128xf32, #tpu.memory_space<vmem>>, vector<8x128xf32>
    %c0_2 = arith.constant 0 : index
    %c0_3 = arith.constant 0 : index
    %4 = vector.load %arg2[%c0_2, %c0_3] : memref<8x32xf32, #tpu.memory_space<vmem>>, vector<8x32xf32>
    %c0_4 = arith.constant 0 : index
    %c0_5 = arith.constant 0 : index
    %5 = vector.load %arg3[%c0_4, %c0_5] : memref<32x128xf32, #tpu.memory_space<vmem>>, vector<32x128xf32>
    %cst = arith.constant dense<0.000000e+00> : vector<8x128xf32>
    %6 = tpu.matmul %4, %5, %cst {dimension_numbers = #tpu.dot_dimension_numbers<[1], [0], [0], [1], [0, 0, 1, 1], [], []>} : vector<8x32xf32>, vector<32x128xf32>, vector<8x128xf32> -> vector<8x128xf32>
    %7 = arith.addf %3, %6 : vector<8x128xf32>
    %c0_6 = arith.constant 0 : index
    %c0_7 = arith.constant 0 : index
    %8 = vector.load %arg8[%c0_6, %c0_7] : memref<8x128xf32, #tpu.memory_space<vmem>>, vector<8x128xf32>
    tpu.vector_store %arg8[%c0_6, %c0_7], %7 {strides = array<i32>} : memref<8x128xf32, #tpu.memory_space<vmem>>, vector<8x128xf32>,
    %c0_i32_8 = arith.constant 0 : i32
    %9 = arith.cmpi eq, %arg1, %c0_i32_8 : i32
    %10 = arith.extui %9 : i1 to i32
    %c0_i32_9 = arith.constant 0 : i32
    %11 = arith.cmpi ne, %10, %c0_i32_9 : i32
    scf.if %11 {
      %c0_10 = arith.constant 0 : index
      %c0_11 = arith.constant 0 : index
      %12 = vector.load %arg8[%c0_10, %c0_11] : memref<8x128xf32, #tpu.memory_space<vmem>>, vector<8x128xf32>
      %c0_12 = arith.constant 0 : index
      %c0_13 = arith.constant 0 : index
      %13 = vector.load %arg4[%c0_12, %c0_13] : memref<1x128xf32, #tpu.memory_space<vmem>>, vector<1x128xf32>
      %14 = vector.broadcast %13 : vector<1x128xf32> to vector<8x128xf32>
      %15 = arith.addf %12, %14 : vector<8x128xf32>
      %cst_14 = arith.constant 0.000000e+00 : f32
      %16 = vector.broadcast %cst_14 : f32 to vector<8x128xf32>
      %17 = arith.maximumf %15, %16 : vector<8x128xf32>
      %c0_15 = arith.constant 0 : index
      %c0_16 = arith.constant 0 : index
      %18 = vector.load %arg5[%c0_15, %c0_16] : memref<128x4xf32, #tpu.memory_space<vmem>>, vector<128x4xf32>
      %cst_17 = arith.constant dense<0.000000e+00> : vector<8x4xf32>
      %19 = tpu.matmul %17, %18, %cst_17 {dimension_numbers = #tpu.dot_dimension_numbers<[1], [0], [0], [1], [0, 0, 1, 1], [], []>} : vector<8x128xf32>, vector<128x4xf32>, vector<8x4xf32> -> vector<8x4xf32>
      %c0_18 = arith.constant 0 : index
      %c0_19 = arith.constant 0 : index
      %20 = vector.load %arg6[%c0_18, %c0_19] : memref<1x4xf32, #tpu.memory_space<vmem>>, vector<1x4xf32>
      %21 = vector.broadcast %20 : vector<1x4xf32> to vector<8x4xf32>
      %22 = arith.addf %19, %21 : vector<8x4xf32>
      %c0_20 = arith.constant 0 : index
      %c0_21 = arith.constant 0 : index
      %23 = vector.load %arg7[%c0_20, %c0_21] : memref<8x4xf32, #tpu.memory_space<vmem>>, vector<8x4xf32>
      tpu.vector_store %arg7[%c0_20, %c0_21], %22 {strides = array<i32>} : memref<8x4xf32, #tpu.memory_space<vmem>>, vector<8x4xf32>,
    } else {
    }
    return
  }
  func.func @transform_0(%arg0: i32, %arg1: i32) -> (i32, i32) {
    %c0_i32 = arith.constant 0 : i32
    return %arg0, %arg1 : i32, i32
  }
  func.func @transform_1(%arg0: i32, %arg1: i32) -> (i32, i32) {
    %c0_i32 = arith.constant 0 : i32
    %c0_i32_0 = arith.constant 0 : i32
    %c0_i32_1 = arith.constant 0 : i32
    return %c0_i32, %c0_i32_0 : i32, i32
  }
  func.func @transform_2(%arg0: i32, %arg1: i32) -> (i32, i32) {
    %c0_i32 = arith.constant 0 : i32
    %c0_i32_0 = arith.constant 0 : i32
    %c0_i32_1 = arith.constant 0 : i32
    return %c0_i32, %c0_i32_0 : i32, i32
  }
  func.func @transform_3(%arg0: i32, %arg1: i32) -> (i32, i32) {
    %c0_i32 = arith.constant 0 : i32
    %c0_i32_0 = arith.constant 0 : i32
    %c0_i32_1 = arith.constant 0 : i32
    return %c0_i32, %c0_i32_0 : i32, i32
  }
  func.func @transform_4(%arg0: i32, %arg1: i32) -> (i32, i32) {
    %c0_i32 = arith.constant 0 : i32
    %c0_i32_0 = arith.constant 0 : i32
    %c0_i32_1 = arith.constant 0 : i32
    return %c0_i32, %c0_i32_0 : i32, i32
  }
  func.func @transform_5(%arg0: i32, %arg1: i32) -> (i32, i32) {
    %c0_i32 = arith.constant 0 : i32
    %c0_i32_0 = arith.constant 0 : i32
    return %arg0, %c0_i32 : i32, i32
  }
}

</mosaic_0001>

<llo_original>
// kernel: tpu_custom_call.1
$region0: #{tpu_custom_call.1}
  #allocation0 [shape = 'u32[]', space=smem, size = 0x4, offset = 0x4, fixed_abs, tag = 'smem constant byte address 0x4 - core index']
  #allocation1 [shape = 'u32[72,128]{1,0:T(1,128)}', space=vmem, size = 0x9000, scoped, tag = 'internal scratch']
  #allocation2 [shape = 'f32[8,128]{1,0:T(8,128)}', space=vmem, size = 0x1000, scoped, tag = 'scratch operand']
  %s0 = inlined_call_operand.vmem [shape: f32[8,32], index: 0, kind: input, shape index: {}]
  %s1 = inlined_call_operand.vmem [shape: f32[32,128], index: 1, kind: input, shape index: {}]
  %s2 = inlined_call_operand.vmem [shape: f32[1,128], index: 2, kind: input, shape index: {}]
  %s3 = inlined_call_operand.vmem [shape: f32[128,4], index: 3, kind: input, shape index: {}]
  %s4 = inlined_call_operand.vmem [shape: f32[1,4], index: 4, kind: input, shape index: {}]
  %s5 = inlined_call_operand.vmem [shape: f32[8,4], index: 5, kind: output, shape index: {}]
  %s6 = sld [smem:[#allocation0]]
  $region38: #{tpu_custom_call.1} parent=0
    _
  %s8 = ssub.s32 1, %s6
  %s9 = scalar_select 0, %s8, %s6
  // Predicated region
  $region2: #{tpu_custom_call.1} parent=0 // pred_check
    _
  $region3: #{tpu_custom_call.1} parent=0 // pred_check_branch
    %11 = sbr.rel (0) target = $region5
  $region4: #{tpu_custom_call.1} parent=0 // pred_region
    _
  $region5: #{tpu_custom_call.1} parent=0 // pred_fallthru
    _
  // Predicated region
  $region6: #{tpu_custom_call.1} parent=0 // pred_check
    _
  $region7: #{tpu_custom_call.1} parent=0 // pred_check_branch
    %13 = sbr.rel (0) target = $region9
  $region8: #{tpu_custom_call.1} parent=0 // pred_region
    _
  $region9: #{tpu_custom_call.1} parent=0 // pred_fallthru
    _
  // Predicated region
  $region10: #{tpu_custom_call.1} parent=0 // pred_check
    _
  $region11: #{tpu_custom_call.1} parent=0 // pred_check_branch
    %15 = sbr.rel (0) target = $region13
  $region12: #{tpu_custom_call.1} parent=0 // pred_region
    _
  $region13: #{tpu_custom_call.1} parent=0 // pred_fallthru
    _
  // Predicated region
  $region14: #{tpu_custom_call.1} parent=0 // pred_check
    _
  $region15: #{tpu_custom_call.1} parent=0 // pred_check_branch
    %17 = sbr.rel (0) target = $region17
  $region16: #{tpu_custom_call.1} parent=0 // pred_region
    _
  $region17: #{tpu_custom_call.1} parent=0 // pred_fallthru
    _
  // Predicated region
  $region18: #{tpu_custom_call.1} parent=0 // pred_check
    _
  $region19: #{tpu_custom_call.1} parent=0 // pred_check_branch
    %19 = sbr.rel (0) target = $region21
  $region20: #{tpu_custom_call.1} parent=0 // pred_region
    _
  $region21: #{tpu_custom_call.1} parent=0 // pred_fallthru
    _
  %p20 = scmp.eq.s32.totalorder 0, 0
  // Predicated region
  $region22: #{tpu_custom_call.1} parent=0 // pred_check
    %p21 = pneg %p20
  $region23: #{tpu_custom_call.1} parent=0 // pred_check_branch
    %23 = sbr.rel (%p21) target = $region25
  $region24: #{tpu_custom_call.1} parent=0 // pred_region
    %24 = vst [vmem:[#allocation2] sm:$0xff] 0.0
  $region25: #{tpu_custom_call.1} parent=0 // pred_fallthru
    _
  %v25 = vld [vmem:[#allocation2] sm:$0xff]
  %v26 = vld [vmem:[%s0] sm:$0xff]
  %v27 = vld [vmem:[%s1] sm:$0xff]
  %v28 = vld [vmem:[%s1 + $0x8] sm:$0xff]
  %v29 = vld [vmem:[%s1 + $0x10] sm:$0xff]
  %v30 = vld [vmem:[%s1 + $0x18] sm:$0xff]
  %vm31 = vcmask 261120
  %v33 = vsel %vm31, %v26, 0
  %35 = vmatpush.msra.mxu0 0.0
  %36 = vmatpush.msra.mxu0 0.0
  %37 = vmatpush.msra.mxu0 0.0
  %38 = vmatpush.msra.mxu0 0.0
  %39 = vmatpush.msra.mxu0 0.0
  %40 = vmatpush.msra.mxu0 0.0
  %41 = vmatpush.msra.mxu0 0.0
  %42 = vmatpush.msra.mxu0 0.0
  %43 = vmatpush.msra.mxu0 0.0
  %44 = vmatpush.msra.mxu0 0.0
  %45 = vmatpush.msra.mxu0 0.0
  %46 = vmatpush.msra.mxu0 0.0
  %47 = vmatpush.msra.mxu0 %v30
  %48 = vmatpush.msra.mxu0 %v29
  %49 = vmatpush.msra.mxu0 %v28
  %50 = vmatpush.msra.mxu0 %v27
  %51 = vmatmul.f32.gmra.mxu0 %v33
  %v52 = vpop.f32.mrf.mxu0
  %v53 = vadd.f32 0.0, %v52
  %54 = vdwg.mxu0
  %v55 = vadd.f32 %v25, %v53
  %56 = vst [vmem:[#allocation2] sm:$0xff] %v55
  // Predicated region
  $region26: #{tpu_custom_call.1} parent=0 // pred_check
    %p57 = pneg %p20
  $region27: #{tpu_custom_call.1} parent=0 // pred_check_branch
    %59 = sbr.rel (%p57) target = $region29
  $region28: #{tpu_custom_call.1} parent=0 // pred_region
    %v60 = vld [vmem:[#allocation2] sm:$0xff]
    %v61 = vld [vmem:[%s2] sm:$0x1]
    %v63 = vperm.slane %v61, 0
    %v65 = vadd.f32 %v60, %v63
    %v66 = vmax.f32 %v65, 0.0
    %v67 = vld [vmem:[%s3] sm:$0xff]
    %v68 = vld [vmem:[%s3 + $0x8] sm:$0xff]
    %v69 = vld [vmem:[%s3 + $0x10] sm:$0xff]
    %v70 = vld [vmem:[%s3 + $0x18] sm:$0xff]
    %v71 = vld [vmem:[%s3 + $0x20] sm:$0xff]
    %v72 = vld [vmem:[%s3 + $0x28] sm:$0xff]
    %v73 = vld [vmem:[%s3 + $0x30] sm:$0xff]
    %v74 = vld [vmem:[%s3 + $0x38] sm:$0xff]
    %v75 = vld [vmem:[%s3 + $0x40] sm:$0xff]
    %v76 = vld [vmem:[%s3 + $0x48] sm:$0xff]
    %v77 = vld [vmem:[%s3 + $0x50] sm:$0xff]
    %v78 = vld [vmem:[%s3 + $0x58] sm:$0xff]
    %v79 = vld [vmem:[%s3 + $0x60] sm:$0xff]
    %v80 = vld [vmem:[%s3 + $0x68] sm:$0xff]
    %v81 = vld [vmem:[%s3 + $0x70] sm:$0xff]
    %v82 = vld [vmem:[%s3 + $0x78] sm:$0xff]
    %v83 = vld [vmem:[%s4] sm:$0x1]
    %v85 = vperm.slane %v83, 0
    %87 = vmatpush.msra.mxu0 %v82
    %88 = vmatpush.msra.mxu0 %v81
    %89 = vmatpush.msra.mxu0 %v80
    %90 = vmatpush.msra.mxu0 %v79
    %91 = vmatpush.msra.mxu0 %v78
    %92 = vmatpush.msra.mxu0 %v77
    %93 = vmatpush.msra.mxu0 %v76
    %94 = vmatpush.msra.mxu0 %v75
    %95 = vmatpush.msra.mxu0 %v74
    %96 = vmatpush.msra.mxu0 %v73
    %97 = vmatpush.msra.mxu0 %v72
    %98 = vmatpush.msra.mxu0 %v71
    %99 = vmatpush.msra.mxu0 %v70
    %100 = vmatpush.msra.mxu0 %v69
    %101 = vmatpush.msra.mxu0 %v68
    %102 = vmatpush.msra.mxu0 %v67
    %103 = vmatmul.f32.gmra.mxu0 %v66
    %v104 = vpop.f32.mrf.mxu0
    %v105 = vadd.f32 %v85, %v104
    %106 = vdwg.mxu0
    %vm107 = vcmask 31744
    %108 = vst.msk [vmem:[%s5] sm:$0xff] %vm107, %v105
  $region29: #{tpu_custom_call.1} parent=0 // pred_fallthru
    _
  // Predicated region
  $region30: #{tpu_custom_call.1} parent=0 // pred_check
    _
  $region31: #{tpu_custom_call.1} parent=0 // pred_check_branch
    %110 = sbr.rel (0) target = $region33
  $region32: #{tpu_custom_call.1} parent=0 // pred_region
    _
  $region33: #{tpu_custom_call.1} parent=0 // pred_fallthru
    _
  // Predicated region
  $region34: #{tpu_custom_call.1} parent=0 // pred_check
    _
  $region35: #{tpu_custom_call.1} parent=0 // pred_check_branch
    %112 = sbr.rel (0) target = $region37
  $region36: #{tpu_custom_call.1} parent=0 // pred_region
    _
  $region37: #{tpu_custom_call.1} parent=0 // pred_fallthru
    _

// kernel: tpu_custom_call.1
$region0: #{tpu_custom_call.1}
  #allocation0 [shape = 'u32[]', space=smem, size = 0x4, offset = 0x4, fixed_abs, tag = 'smem constant byte address 0x4 - core index']
  #allocation1 [shape = 'u32[72,128]{1,0:T(1,128)}', space=vmem, size = 0x9000, scoped, tag = 'internal scratch']
  #allocation2 [shape = 'f32[8,128]{1,0:T(8,128)}', space=vmem, size = 0x1000, scoped, tag = 'scratch operand']
  %s0 = inlined_call_operand.vmem [shape: f32[8,32], index: 0, kind: input, shape index: {}]
  %s1 = inlined_call_operand.vmem [shape: f32[32,128], index: 1, kind: input, shape index: {}]
  %s2 = inlined_call_operand.vmem [shape: f32[1,128], index: 2, kind: input, shape index: {}]
  %s3 = inlined_call_operand.vmem [shape: f32[128,4], index: 3, kind: input, shape index: {}]
  %s4 = inlined_call_operand.vmem [shape: f32[1,4], index: 4, kind: input, shape index: {}]
  %s5 = inlined_call_operand.vmem [shape: f32[8,4], index: 5, kind: output, shape index: {}]
  %s6 = sld [smem:[#allocation0]]
  $region38: #{tpu_custom_call.1} parent=0
    _
  %s8 = ssub.s32 1, %s6
  %s9 = scalar_select 0, %s8, %s6
  // Predicated region
  $region2: #{tpu_custom_call.1} parent=0 // pred_check
    _
  $region3: #{tpu_custom_call.1} parent=0 // pred_check_branch
    %11 = sbr.rel (0) target = $region5
  $region4: #{tpu_custom_call.1} parent=0 // pred_region
    _
  $region5: #{tpu_custom_call.1} parent=0 // pred_fallthru
    _
  // Predicated region
  $region6: #{tpu_custom_call.1} parent=0 // pred_check
    _
  $region7: #{tpu_custom_call.1} parent=0 // pred_check_branch
    %13 = sbr.rel (0) target = $region9
  $region8: #{tpu_custom_call.1} parent=0 // pred_region
    _
  $region9: #{tpu_custom_call.1} parent=0 // pred_fallthru
    _
  // Predicated region
  $region10: #{tpu_custom_call.1} parent=0 // pred_check
    _
  $region11: #{tpu_custom_call.1} parent=0 // pred_check_branch
    %15 = sbr.rel (0) target = $region13
  $region12: #{tpu_custom_call.1} parent=0 // pred_region
    _
  $region13: #{tpu_custom_call.1} parent=0 // pred_fallthru
    _
  // Predicated region
  $region14: #{tpu_custom_call.1} parent=0 // pred_check
    _
  $region15: #{tpu_custom_call.1} parent=0 // pred_check_branch
    %17 = sbr.rel (0) target = $region17
  $region16: #{tpu_custom_call.1} parent=0 // pred_region
    _
  $region17: #{tpu_custom_call.1} parent=0 // pred_fallthru
    _
  // Predicated region
  $region18: #{tpu_custom_call.1} parent=0 // pred_check
    _
  $region19: #{tpu_custom_call.1} parent=0 // pred_check_branch
    %19 = sbr.rel (0) target = $region21
  $region20: #{tpu_custom_call.1} parent=0 // pred_region
    _
  $region21: #{tpu_custom_call.1} parent=0 // pred_fallthru
    _
  %p20 = scmp.eq.s32.totalorder 0, 0
  // Predicated region
  $region22: #{tpu_custom_call.1} parent=0 // pred_check
    %p21 = pneg %p20
  $region23: #{tpu_custom_call.1} parent=0 // pred_check_branch
    %23 = sbr.rel (%p21) target = $region25
  $region24: #{tpu_custom_call.1} parent=0 // pred_region
    %24 = vst [vmem:[#allocation2] sm:$0xff] 0.0
  $region25: #{tpu_custom_call.1} parent=0 // pred_fallthru
    _
  %v25 = vld [vmem:[#allocation2] sm:$0xff]
  %v26 = vld [vmem:[%s0] sm:$0xff]
  %v27 = vld [vmem:[%s1] sm:$0xff]
  %v28 = vld [vmem:[%s1 + $0x8] sm:$0xff]
  %v29 = vld [vmem:[%s1 + $0x10] sm:$0xff]
  %v30 = vld [vmem:[%s1 + $0x18] sm:$0xff]
  %vm31 = vcmask 261120
  %v33 = vsel %vm31, %v26, 0
  %35 = vmatpush.msra.mxu0 0.0
  %36 = vmatpush.msra.mxu0 0.0
  %37 = vmatpush.msra.mxu0 0.0
  %38 = vmatpush.msra.mxu0 0.0
  %39 = vmatpush.msra.mxu0 0.0
  %40 = vmatpush.msra.mxu0 0.0
  %41 = vmatpush.msra.mxu0 0.0
  %42 = vmatpush.msra.mxu0 0.0
  %43 = vmatpush.msra.mxu0 0.0
  %44 = vmatpush.msra.mxu0 0.0
  %45 = vmatpush.msra.mxu0 0.0
  %46 = vmatpush.msra.mxu0 0.0
  %47 = vmatpush.msra.mxu0 %v30
  %48 = vmatpush.msra.mxu0 %v29
  %49 = vmatpush.msra.mxu0 %v28
  %50 = vmatpush.msra.mxu0 %v27
  %51 = vmatmul.f32.gmra.mxu0 %v33
  %v52 = vpop.f32.mrf.mxu0
  %v53 = vadd.f32 0.0, %v52
  %54 = vdwg.mxu0
  %v55 = vadd.f32 %v25, %v53
  %56 = vst [vmem:[#allocation2] sm:$0xff] %v55
  // Predicated region
  $region26: #{tpu_custom_call.1} parent=0 // pred_check
    %p57 = pneg %p20
  $region27: #{tpu_custom_call.1} parent=0 // pred_check_branch
    %59 = sbr.rel (%p57) target = $region29
  $region28: #{tpu_custom_call.1} parent=0 // pred_region
    %v60 = vld [vmem:[#allocation2] sm:$0xff]
    %v61 = vld [vmem:[%s2] sm:$0x1]
    %v63 = vperm.slane %v61, 0
    %v65 = vadd.f32 %v60, %v63
    %v66 = vmax.f32 %v65, 0.0
    %v67 = vld [vmem:[%s3] sm:$0xff]
    %v68 = vld [vmem:[%s3 + $0x8] sm:$0xff]
    %v69 = vld [vmem:[%s3 + $0x10] sm:$0xff]
    %v70 = vld [vmem:[%s3 + $0x18] sm:$0xff]
    %v71 = vld [vmem:[%s3 + $0x20] sm:$0xff]
    %v72 = vld [vmem:[%s3 + $0x28] sm:$0xff]
    %v73 = vld [vmem:[%s3 + $0x30] sm:$0xff]
    %v74 = vld [vmem:[%s3 + $0x38] sm:$0xff]
    %v75 = vld [vmem:[%s3 + $0x40] sm:$0xff]
    %v76 = vld [vmem:[%s3 + $0x48] sm:$0xff]
    %v77 = vld [vmem:[%s3 + $0x50] sm:$0xff]
    %v78 = vld [vmem:[%s3 + $0x58] sm:$0xff]
    %v79 = vld [vmem:[%s3 + $0x60] sm:$0xff]
    %v80 = vld [vmem:[%s3 + $0x68] sm:$0xff]
    %v81 = vld [vmem:[%s3 + $0x70] sm:$0xff]
    %v82 = vld [vmem:[%s3 + $0x78] sm:$0xff]
    %v83 = vld [vmem:[%s4] sm:$0x1]
    %v85 = vperm.slane %v83, 0
    %87 = vmatpush.msra.mxu0 %v82
    %88 = vmatpush.msra.mxu0 %v81
    %89 = vmatpush.msra.mxu0 %v80
    %90 = vmatpush.msra.mxu0 %v79
    %91 = vmatpush.msra.mxu0 %v78
    %92 = vmatpush.msra.mxu0 %v77
    %93 = vmatpush.msra.mxu0 %v76
    %94 = vmatpush.msra.mxu0 %v75
    %95 = vmatpush.msra.mxu0 %v74
    %96 = vmatpush.msra.mxu0 %v73
    %97 = vmatpush.msra.mxu0 %v72
    %98 = vmatpush.msra.mxu0 %v71
    %99 = vmatpush.msra.mxu0 %v70
    %100 = vmatpush.msra.mxu0 %v69
    %101 = vmatpush.msra.mxu0 %v68
    %102 = vmatpush.msra.mxu0 %v67
    %103 = vmatmul.f32.gmra.mxu0 %v66
    %v104 = vpop.f32.mrf.mxu0
    %v105 = vadd.f32 %v85, %v104
    %106 = vdwg.mxu0
    %vm107 = vcmask 31744
    %108 = vst.msk [vmem:[%s5] sm:$0xff] %vm107, %v105
  $region29: #{tpu_custom_call.1} parent=0 // pred_fallthru
    _
  // Predicated region
  $region30: #{tpu_custom_call.1} parent=0 // pred_check
    _
  $region31: #{tpu_custom_call.1} parent=0 // pred_check_branch
    %110 = sbr.rel (0) target = $region33
  $region32: #{tpu_custom_call.1} parent=0 // pred_region
    _
  $region33: #{tpu_custom_call.1} parent=0 // pred_fallthru
    _
  // Predicated region
  $region34: #{tpu_custom_call.1} parent=0 // pred_check
    _
  $region35: #{tpu_custom_call.1} parent=0 // pred_check_branch
    %112 = sbr.rel (0) target = $region37
  $region36: #{tpu_custom_call.1} parent=0 // pred_region
    _
  $region37: #{tpu_custom_call.1} parent=0 // pred_fallthru
    _

</llo_original>
